<compile_context>
chip_gen: v7x
topology: tpu7x:2x2x1
jax: 0.10.0
libtpu: 0.0.40
codegen_flags: <defaults>
</compile_context>

<pallas_src>
import functools

import jax
import jax.numpy as jnp
from jax.experimental import pallas as pl
from jax.experimental.pallas import tpu as pltpu

EPS = 1e-5
LANE = 128  # lane width: every feature axis is padded to this for lane-dense I/O


def _unit_max(z, o, n_units, lane):
    """Max over maxout units of one packed (N, lane) matmul result.

    z lanes are unit-major: lane u*o + j holds (unit u, output feature j).
    Only lanes [0, o) of the result are meaningful; lanes >= o hold
    cross-unit values that are neutralized downstream (zero-padded gamma/beta
    in the next BatchNorm, final [:, :out] slice for the last layer).
    pltpu.roll follows jnp.roll semantics; shift = lane - d is the positive
    equivalent of -d, i.e. rolled[j] = z[j + d] for the lanes we keep.
    """
    if n_units & (n_units - 1) == 0:            # power of two -> log-tree reduce
        m = z
        k = n_units // 2
        while k >= 1:
            m = jnp.maximum(m, pltpu.roll(m, shift=lane - k * o, axis=1))
            k //= 2
        return m
    m = z                                       # general: n_units-1 rolls of z
    for u in range(1, n_units):
        m = jnp.maximum(m, pltpu.roll(z, shift=lane - u * o, axis=1))
    return m


def bn_maxout_kernel(x_ref, vec_ref, w_ref, out_ref, *, n_units, out_sizes, lane):
    """Fused forward of the whole [BatchNorm1d -> MaxoutLinear] stack.

    x_ref   : (N, lane)            f32   lane-padded input
    vec_ref : (L, 3, lane)         f32   per layer rows: gamma, beta, bias
    w_ref   : (L, lane, lane)      bf16  per layer packed (fi, U*o) weight
    out_ref : (N, lane)            f32
    """
    n = x_ref.shape[0]
    inv_n = jnp.float32(1.0 / n)
    act = x_ref[...].astype(jnp.float32)                  # (N, lane) f32

    for layer, o in enumerate(out_sizes):
        v = vec_ref[layer]                                # (3, lane) f32
        gamma, beta, bias = v[0:1], v[1:2], v[2:3]        # each (1, lane)

        # BatchNorm1d, training-mode batch statistics (biased variance).
        # One-pass moments (two independent reductions) + fully folded affine.
        mean = jnp.sum(act, axis=0, keepdims=True) * inv_n
        ex2 = jnp.sum(act * act, axis=0, keepdims=True) * inv_n
        var = jnp.maximum(ex2 - mean * mean, 0.0)         # clamp FP cancellation
        scale = gamma * jax.lax.rsqrt(var + EPS)
        shift = beta - mean * scale
        xn = (act * scale + shift).astype(jnp.bfloat16)   # bf16 only at MXU edge

        # MaxoutLinear: ONE lane-dense MXU dot for all units at once, then an
        # XLU roll+max reduction across units (XLU slot otherwise idle).
        z = jnp.dot(xn, w_ref[layer],
                    preferred_element_type=jnp.float32) + bias     # (N, lane)
        act = _unit_max(z, o, n_units, lane)              # stays in vregs/VMEM

    out_ref[...] = act.astype(out_ref.dtype)              # lane-dense store


def _pad_lanes(a, lane):
    pad = lane - a.shape[-1]
    if pad == 0:
        return a
    return jnp.pad(a, [(0, 0)] * (a.ndim - 1) + [(0, pad)])


def prepare_params(params, n_units, lane=LANE):
    """ONE-TIME repack of the reference parameters into kernel slabs.

    Returns:
      vec_slab : (L, 3, lane) f32   rows = (gamma, beta, bias), zero lane-padded
      w_slab   : (L, lane, lane) bf16  original (fi, U*o) weights, zero-padded
      out_sizes: tuple of per-layer output sizes (static)
    Zero-padding gamma/beta beyond fan-in is what neutralizes the cross-unit
    garbage lanes left by the roll+max of the previous layer.
    """
    vecs, ws, out_sizes = [], [], []
    for p in params:
        fi = p["gamma"].shape[1]
        o = p["out_size"]
        assert fi <= lane and n_units * o <= lane, (
            "toy fused kernel assumes fan-in and n_units*out <= 128; "
            "larger sizes need the layer/UO-tiled grid described in the NOTE")
        out_sizes.append(o)
        gamma = _pad_lanes(p["gamma"].astype(jnp.float32), lane)     # (1, lane)
        beta = _pad_lanes(p["beta"].astype(jnp.float32), lane)       # (1, lane)
        bias = _pad_lanes(p["b"].astype(jnp.float32), lane)          # (1, lane)
        vecs.append(jnp.concatenate([gamma, beta, bias], axis=0))    # (3, lane)
        w = jnp.pad(p["w"], ((0, lane - fi), (0, lane - n_units * o)))
        ws.append(w.astype(jnp.bfloat16))                            # (lane, lane)
    return jnp.stack(vecs), jnp.stack(ws), tuple(out_sizes)


@functools.partial(jax.jit, static_argnames=("n_units", "out_sizes", "lane"))
def batchnorm_maxout_forward(x, vec_slab, w_slab, *, n_units, out_sizes, lane=LANE):
    """Run the whole network as ONE Pallas kernel call (jitted)."""
    n, f_in = x.shape
    n_layers = len(out_sizes)
    assert f_in <= lane
    x_pad = _pad_lanes(x.astype(jnp.float32), lane)

    kernel = functools.partial(bn_maxout_kernel, n_units=n_units,
                               out_sizes=out_sizes, lane=lane)
    out_pad = pl.pallas_call(
        kernel,
        out_shape=jax.ShapeDtypeStruct((n, lane), x.dtype),
        grid=(1,),
        in_specs=[
            pl.BlockSpec((n, lane), lambda i: (0, 0)),
            pl.BlockSpec((n_layers, 3, lane), lambda i: (0, 0, 0)),
            pl.BlockSpec((n_layers, lane, lane), lambda i: (0, 0, 0)),
        ],
        out_specs=pl.BlockSpec((n, lane), lambda i: (0, 0)),
        compiler_params=pltpu.CompilerParams(
            dimension_semantics=("arbitrary",)),
    )(x_pad, vec_slab, w_slab)

    return out_pad[:, :out_sizes[-1]]


def init_params(key, input_size, hidden_sizes, output_size, n_units):
    """Deterministic parameter init (PyTorch-style uniform for Linear,
    gamma=1 / beta=0 for BatchNorm). Weights kept in the reference
    (Fin, n_units*out) layout; prepare_params() re-packs them once."""
    params = []
    dims_in = [input_size] + hidden_sizes
    dims_out = hidden_sizes + [output_size]
    for i, o in zip(dims_in, dims_out):
        key, kw, kb = jax.random.split(key, 3)
        bound = 1.0 / jnp.sqrt(jnp.float32(i))
        w = jax.random.uniform(kw, (i, n_units * o), jnp.float32,
                               minval=-bound, maxval=bound)
        b = jax.random.uniform(kb, (1, n_units * o), jnp.float32,
                               minval=-bound, maxval=bound)
        gamma = jnp.ones((1, i), jnp.float32)
        beta = jnp.zeros((1, i), jnp.float32)
        params.append(dict(gamma=gamma, beta=beta, w=w, b=b, out_size=o))
    return params


def reference_forward_bf16(x, params, n_units):
    """Pure-JAX reference mirroring the kernel math exactly (one-pass f32 BN
    moments, bf16 matmul operands with f32 accumulation)."""
    for p in params:
        inv_n = jnp.float32(1.0 / x.shape[0])
        mean = jnp.sum(x, axis=0, keepdims=True) * inv_n
        ex2 = jnp.sum(x * x, axis=0, keepdims=True) * inv_n
        var = jnp.maximum(ex2 - mean * mean, 0.0)
        scale = p["gamma"] * jax.lax.rsqrt(var + EPS)
        shift = p["beta"] - mean * scale
        xn = (x * scale + shift).astype(jnp.bfloat16)
        z = jnp.dot(xn, p["w"].astype(jnp.bfloat16),
                    preferred_element_type=jnp.float32) + p["b"]
        x = jnp.max(z.reshape(-1, n_units, p["out_size"]), axis=1)
    return x


def reference_forward_f32(x, params, n_units):
    """Pure-JAX reference with literal PyTorch (full-f32) semantics."""
    for p in params:
        mean = jnp.mean(x, axis=0, keepdims=True)
        var = jnp.mean((x - mean) ** 2, axis=0, keepdims=True)
        xn = (x - mean) / jnp.sqrt(var + EPS) * p["gamma"] + p["beta"]
        z = xn @ p["w"] + p["b"]
        x = jnp.max(z.reshape(-1, n_units, p["out_size"]), axis=1)
    return x


if __name__ == "__main__":
    # Small shapes consistent with the module: x is (batch, input_size).
    batch = 8
    input_size = 32
    hidden_sizes = [32, 32]
    output_size = 16
    n_units = 4
    dropout = 0.0  # dropout==0 -> no Dropout layers (deterministic)

    key = jax.random.PRNGKey(0)
    kx, kp = jax.random.split(key)
    x = jax.random.normal(kx, (batch, input_size), jnp.float32)
    params = init_params(kp, input_size, hidden_sizes, output_size, n_units)

    # One-time packing, then a jitted single-kernel forward.
    vec_slab, w_slab, out_sizes = prepare_params(params, n_units)
    out = batchnorm_maxout_forward(x, vec_slab, w_slab,
                                   n_units=n_units, out_sizes=out_sizes)
    out = jax.block_until_ready(out)
    assert out.shape == (batch, output_size)

    # Tight check against a reference with identical (bf16-MXU, f32-acc) math.
    ref_bf16 = reference_forward_bf16(x, params, n_units)
    assert jnp.allclose(out, ref_bf16, atol=5e-3, rtol=5e-3), (
        float(jnp.max(jnp.abs(out - ref_bf16))))

    # Loose check against literal f32 PyTorch semantics (covers bf16 rounding
    # and the one-pass variance rewrite).
    ref_f32 = reference_forward_f32(x, params, n_units)
    assert jnp.allclose(out, ref_f32, atol=1e-1, rtol=1e-1), (
        float(jnp.max(jnp.abs(out - ref_f32))))

    print("KERNEL_OK")
</pallas_src>

<mosaic_0001>
module attributes {stable_mosaic.version = 11 : i64} {
  func.func @bn_maxout_kernel(%arg0: i32, %arg1: memref<8x128xf32, #tpu.memory_space<vmem>>, %arg2: memref<3x3x128xf32, #tpu.memory_space<vmem>>, %arg3: memref<3x128x128xbf16, #tpu.memory_space<vmem>>, %arg4: memref<8x128xf32, #tpu.memory_space<vmem>>) attributes {dimension_semantics = [#tpu.dimension_semantics<arbitrary>], iteration_bounds = array<i64: 1>, scalar_prefetch = 0 : i64, scratch_operands = 0 : i64, tpu.core_type = #tpu.core_type<tc>, window_params = [{pipeline_mode = #tpu.pipeline_mode<synchronous>, transform_indices = @transform_0, window_bounds = array<i64: 8, 128>}, {pipeline_mode = #tpu.pipeline_mode<synchronous>, transform_indices = @transform_1, window_bounds = array<i64: 3, 3, 128>}, {pipeline_mode = #tpu.pipeline_mode<synchronous>, transform_indices = @transform_2, window_bounds = array<i64: 3, 128, 128>}, {pipeline_mode = #tpu.pipeline_mode<synchronous>, transform_indices = @transform_3, window_bounds = array<i64: 8, 128>}]} {
    %c0 = arith.constant 0 : index
    %c0_0 = arith.constant 0 : index
    %0 = vector.load %arg1[%c0, %c0_0] : memref<8x128xf32, #tpu.memory_space<vmem>>, vector<8x128xf32>
    %c0_1 = arith.constant 0 : index
    %c0_2 = arith.constant 0 : index
    %c0_3 = arith.constant 0 : index
    %1 = vector.load %arg2[%c0_1, %c0_2, %c0_3] : memref<3x3x128xf32, #tpu.memory_space<vmem>>, vector<1x3x128xf32>
    %2 = vector.shape_cast %1 : vector<1x3x128xf32> to vector<3x128xf32>
    %3 = vector.extract_strided_slice %2 {offsets = [0, 0], sizes = [1, 128], strides = [1, 1]} : vector<3x128xf32> to vector<1x128xf32>
    %4 = vector.extract_strided_slice %2 {offsets = [1, 0], sizes = [1, 128], strides = [1, 1]} : vector<3x128xf32> to vector<1x128xf32>
    %5 = vector.extract_strided_slice %2 {offsets = [2, 0], sizes = [1, 128], strides = [1, 1]} : vector<3x128xf32> to vector<1x128xf32>
    %cst = arith.constant dense<0.000000e+00> : vector<128xf32>
    %6 = vector.multi_reduction <add>, %0, %cst [0] : vector<8x128xf32> to vector<128xf32>
    %7 = vector.shape_cast %6 : vector<128xf32> to vector<1x128xf32>
    %cst_4 = arith.constant 1.250000e-01 : f32
    %8 = vector.broadcast %cst_4 : f32 to vector<1x128xf32>
    %9 = arith.mulf %7, %8 : vector<1x128xf32>
    %10 = arith.mulf %0, %0 : vector<8x128xf32>
    %cst_5 = arith.constant dense<0.000000e+00> : vector<128xf32>
    %11 = vector.multi_reduction <add>, %10, %cst_5 [0] : vector<8x128xf32> to vector<128xf32>
    %12 = vector.shape_cast %11 : vector<128xf32> to vector<1x128xf32>
    %cst_6 = arith.constant 1.250000e-01 : f32
    %13 = vector.broadcast %cst_6 : f32 to vector<1x128xf32>
    %14 = arith.mulf %12, %13 : vector<1x128xf32>
    %15 = arith.mulf %9, %9 : vector<1x128xf32>
    %16 = arith.subf %14, %15 : vector<1x128xf32>
    %cst_7 = arith.constant 0.000000e+00 : f32
    %17 = vector.broadcast %cst_7 : f32 to vector<1x128xf32>
    %18 = arith.maximumf %16, %17 : vector<1x128xf32>
    %cst_8 = arith.constant 9.99999974E-6 : f32
    %19 = vector.broadcast %cst_8 : f32 to vector<1x128xf32>
    %20 = arith.addf %18, %19 : vector<1x128xf32>
    %21 = math.rsqrt %20 : vector<1x128xf32>
    %22 = arith.mulf %3, %21 : vector<1x128xf32>
    %23 = arith.mulf %9, %22 : vector<1x128xf32>
    %24 = arith.subf %4, %23 : vector<1x128xf32>
    %25 = vector.broadcast %22 : vector<1x128xf32> to vector<8x128xf32>
    %26 = arith.mulf %0, %25 : vector<8x128xf32>
    %27 = vector.broadcast %24 : vector<1x128xf32> to vector<8x128xf32>
    %28 = arith.addf %26, %27 : vector<8x128xf32>
    %29 = arith.truncf %28 : vector<8x128xf32> to vector<8x128xbf16>
    %c0_9 = arith.constant 0 : index
    %c0_10 = arith.constant 0 : index
    %c0_11 = arith.constant 0 : index
    %30 = vector.load %arg3[%c0_9, %c0_10, %c0_11] : memref<3x128x128xbf16, #tpu.memory_space<vmem>>, vector<1x128x128xbf16>
    %31 = vector.shape_cast %30 : vector<1x128x128xbf16> to vector<128x128xbf16>
    %cst_12 = arith.constant dense<0.000000e+00> : vector<8x128xf32>
    %32 = tpu.matmul %29, %31, %cst_12 {dimension_numbers = #tpu.dot_dimension_numbers<[1], [0], [0], [1], [0, 0, 1, 1], [], []>} : vector<8x128xbf16>, vector<128x128xbf16>, vector<8x128xf32> -> vector<8x128xf32>
    %33 = vector.broadcast %5 : vector<1x128xf32> to vector<8x128xf32>
    %34 = arith.addf %32, %33 : vector<8x128xf32>
    %c64_i32 = arith.constant 64 : i32
    %35 = tpu.dynamic_rotate %34 by %c64_i32 dim 1 : vector<8x128xf32>, i32 -> vector<8x128xf32>
    %36 = arith.maximumf %34, %35 : vector<8x128xf32>
    %c96_i32 = arith.constant 96 : i32
    %37 = tpu.dynamic_rotate %36 by %c96_i32 dim 1 : vector<8x128xf32>, i32 -> vector<8x128xf32>
    %38 = arith.maximumf %36, %37 : vector<8x128xf32>
    %c1 = arith.constant 1 : index
    %c0_13 = arith.constant 0 : index
    %c0_14 = arith.constant 0 : index
    %39 = vector.load %arg2[%c1, %c0_13, %c0_14] : memref<3x3x128xf32, #tpu.memory_space<vmem>>, vector<1x3x128xf32>
    %40 = vector.shape_cast %39 : vector<1x3x128xf32> to vector<3x128xf32>
    %41 = vector.extract_strided_slice %40 {offsets = [0, 0], sizes = [1, 128], strides = [1, 1]} : vector<3x128xf32> to vector<1x128xf32>
    %42 = vector.extract_strided_slice %40 {offsets = [1, 0], sizes = [1, 128], strides = [1, 1]} : vector<3x128xf32> to vector<1x128xf32>
    %43 = vector.extract_strided_slice %40 {offsets = [2, 0], sizes = [1, 128], strides = [1, 1]} : vector<3x128xf32> to vector<1x128xf32>
    %cst_15 = arith.constant dense<0.000000e+00> : vector<128xf32>
    %44 = vector.multi_reduction <add>, %38, %cst_15 [0] : vector<8x128xf32> to vector<128xf32>
    %45 = vector.shape_cast %44 : vector<128xf32> to vector<1x128xf32>
    %cst_16 = arith.constant 1.250000e-01 : f32
    %46 = vector.broadcast %cst_16 : f32 to vector<1x128xf32>
    %47 = arith.mulf %45, %46 : vector<1x128xf32>
    %48 = arith.mulf %38, %38 : vector<8x128xf32>
    %cst_17 = arith.constant dense<0.000000e+00> : vector<128xf32>
    %49 = vector.multi_reduction <add>, %48, %cst_17 [0] : vector<8x128xf32> to vector<128xf32>
    %50 = vector.shape_cast %49 : vector<128xf32> to vector<1x128xf32>
    %cst_18 = arith.constant 1.250000e-01 : f32
    %51 = vector.broadcast %cst_18 : f32 to vector<1x128xf32>
    %52 = arith.mulf %50, %51 : vector<1x128xf32>
    %53 = arith.mulf %47, %47 : vector<1x128xf32>
    %54 = arith.subf %52, %53 : vector<1x128xf32>
    %cst_19 = arith.constant 0.000000e+00 : f32
    %55 = vector.broadcast %cst_19 : f32 to vector<1x128xf32>
    %56 = arith.maximumf %54, %55 : vector<1x128xf32>
    %cst_20 = arith.constant 9.99999974E-6 : f32
    %57 = vector.broadcast %cst_20 : f32 to vector<1x128xf32>
    %58 = arith.addf %56, %57 : vector<1x128xf32>
    %59 = math.rsqrt %58 : vector<1x128xf32>
    %60 = arith.mulf %41, %59 : vector<1x128xf32>
    %61 = arith.mulf %47, %60 : vector<1x128xf32>
    %62 = arith.subf %42, %61 : vector<1x128xf32>
    %63 = vector.broadcast %60 : vector<1x128xf32> to vector<8x128xf32>
    %64 = arith.mulf %38, %63 : vector<8x128xf32>
    %65 = vector.broadcast %62 : vector<1x128xf32> to vector<8x128xf32>
    %66 = arith.addf %64, %65 : vector<8x128xf32>
    %67 = arith.truncf %66 : vector<8x128xf32> to vector<8x128xbf16>
    %c1_21 = arith.constant 1 : index
    %c0_22 = arith.constant 0 : index
    %c0_23 = arith.constant 0 : index
    %68 = vector.load %arg3[%c1_21, %c0_22, %c0_23] : memref<3x128x128xbf16, #tpu.memory_space<vmem>>, vector<1x128x128xbf16>
    %69 = vector.shape_cast %68 : vector<1x128x128xbf16> to vector<128x128xbf16>
    %cst_24 = arith.constant dense<0.000000e+00> : vector<8x128xf32>
    %70 = tpu.matmul %67, %69, %cst_24 {dimension_numbers = #tpu.dot_dimension_numbers<[1], [0], [0], [1], [0, 0, 1, 1], [], []>} : vector<8x128xbf16>, vector<128x128xbf16>, vector<8x128xf32> -> vector<8x128xf32>
    %71 = vector.broadcast %43 : vector<1x128xf32> to vector<8x128xf32>
    %72 = arith.addf %70, %71 : vector<8x128xf32>
    %c64_i32_25 = arith.constant 64 : i32
    %73 = tpu.dynamic_rotate %72 by %c64_i32_25 dim 1 : vector<8x128xf32>, i32 -> vector<8x128xf32>
    %74 = arith.maximumf %72, %73 : vector<8x128xf32>
    %c96_i32_26 = arith.constant 96 : i32
    %75 = tpu.dynamic_rotate %74 by %c96_i32_26 dim 1 : vector<8x128xf32>, i32 -> vector<8x128xf32>
    %76 = arith.maximumf %74, %75 : vector<8x128xf32>
    %c2 = arith.constant 2 : index
    %c0_27 = arith.constant 0 : index
    %c0_28 = arith.constant 0 : index
    %77 = vector.load %arg2[%c2, %c0_27, %c0_28] : memref<3x3x128xf32, #tpu.memory_space<vmem>>, vector<1x3x128xf32>
    %78 = vector.shape_cast %77 : vector<1x3x128xf32> to vector<3x128xf32>
    %79 = vector.extract_strided_slice %78 {offsets = [0, 0], sizes = [1, 128], strides = [1, 1]} : vector<3x128xf32> to vector<1x128xf32>
    %80 = vector.extract_strided_slice %78 {offsets = [1, 0], sizes = [1, 128], strides = [1, 1]} : vector<3x128xf32> to vector<1x128xf32>
    %81 = vector.extract_strided_slice %78 {offsets = [2, 0], sizes = [1, 128], strides = [1, 1]} : vector<3x128xf32> to vector<1x128xf32>
    %cst_29 = arith.constant dense<0.000000e+00> : vector<128xf32>
    %82 = vector.multi_reduction <add>, %76, %cst_29 [0] : vector<8x128xf32> to vector<128xf32>
    %83 = vector.shape_cast %82 : vector<128xf32> to vector<1x128xf32>
    %cst_30 = arith.constant 1.250000e-01 : f32
    %84 = vector.broadcast %cst_30 : f32 to vector<1x128xf32>
    %85 = arith.mulf %83, %84 : vector<1x128xf32>
    %86 = arith.mulf %76, %76 : vector<8x128xf32>
    %cst_31 = arith.constant dense<0.000000e+00> : vector<128xf32>
    %87 = vector.multi_reduction <add>, %86, %cst_31 [0] : vector<8x128xf32> to vector<128xf32>
    %88 = vector.shape_cast %87 : vector<128xf32> to vector<1x128xf32>
    %cst_32 = arith.constant 1.250000e-01 : f32
    %89 = vector.broadcast %cst_32 : f32 to vector<1x128xf32>
    %90 = arith.mulf %88, %89 : vector<1x128xf32>
    %91 = arith.mulf %85, %85 : vector<1x128xf32>
    %92 = arith.subf %90, %91 : vector<1x128xf32>
    %cst_33 = arith.constant 0.000000e+00 : f32
    %93 = vector.broadcast %cst_33 : f32 to vector<1x128xf32>
    %94 = arith.maximumf %92, %93 : vector<1x128xf32>
    %cst_34 = arith.constant 9.99999974E-6 : f32
    %95 = vector.broadcast %cst_34 : f32 to vector<1x128xf32>
    %96 = arith.addf %94, %95 : vector<1x128xf32>
    %97 = math.rsqrt %96 : vector<1x128xf32>
    %98 = arith.mulf %79, %97 : vector<1x128xf32>
    %99 = arith.mulf %85, %98 : vector<1x128xf32>
    %100 = arith.subf %80, %99 : vector<1x128xf32>
    %101 = vector.broadcast %98 : vector<1x128xf32> to vector<8x128xf32>
    %102 = arith.mulf %76, %101 : vector<8x128xf32>
    %103 = vector.broadcast %100 : vector<1x128xf32> to vector<8x128xf32>
    %104 = arith.addf %102, %103 : vector<8x128xf32>
    %105 = arith.truncf %104 : vector<8x128xf32> to vector<8x128xbf16>
    %c2_35 = arith.constant 2 : index
    %c0_36 = arith.constant 0 : index
    %c0_37 = arith.constant 0 : index
    %106 = vector.load %arg3[%c2_35, %c0_36, %c0_37] : memref<3x128x128xbf16, #tpu.memory_space<vmem>>, vector<1x128x128xbf16>
    %107 = vector.shape_cast %106 : vector<1x128x128xbf16> to vector<128x128xbf16>
    %cst_38 = arith.constant dense<0.000000e+00> : vector<8x128xf32>
    %108 = tpu.matmul %105, %107, %cst_38 {dimension_numbers = #tpu.dot_dimension_numbers<[1], [0], [0], [1], [0, 0, 1, 1], [], []>} : vector<8x128xbf16>, vector<128x128xbf16>, vector<8x128xf32> -> vector<8x128xf32>
    %109 = vector.broadcast %81 : vector<1x128xf32> to vector<8x128xf32>
    %110 = arith.addf %108, %109 : vector<8x128xf32>
    %c96_i32_39 = arith.constant 96 : i32
    %111 = tpu.dynamic_rotate %110 by %c96_i32_39 dim 1 : vector<8x128xf32>, i32 -> vector<8x128xf32>
    %112 = arith.maximumf %110, %111 : vector<8x128xf32>
    %c112_i32 = arith.constant 112 : i32
    %113 = tpu.dynamic_rotate %112 by %c112_i32 dim 1 : vector<8x128xf32>, i32 -> vector<8x128xf32>
    %114 = arith.maximumf %112, %113 : vector<8x128xf32>
    %c0_40 = arith.constant 0 : index
    %c0_41 = arith.constant 0 : index
    %115 = vector.load %arg4[%c0_40, %c0_41] : memref<8x128xf32, #tpu.memory_space<vmem>>, vector<8x128xf32>
    tpu.vector_store %arg4[%c0_40, %c0_41], %114 {strides = array<i32>} : memref<8x128xf32, #tpu.memory_space<vmem>>, vector<8x128xf32>,
    return
  }
  func.func @transform_0(%arg0: i32) -> (i32, i32) {
    %c0_i32 = arith.constant 0 : i32
    %c0_i32_0 = arith.constant 0 : i32
    %c0_i32_1 = arith.constant 0 : i32
    return %c0_i32, %c0_i32_0 : i32, i32
  }
  func.func @transform_1(%arg0: i32) -> (i32, i32, i32) {
    %c0_i32 = arith.constant 0 : i32
    %c0_i32_0 = arith.constant 0 : i32
    %c0_i32_1 = arith.constant 0 : i32
    %c0_i32_2 = arith.constant 0 : i32
    return %c0_i32, %c0_i32_0, %c0_i32_1 : i32, i32, i32
  }
  func.func @transform_2(%arg0: i32) -> (i32, i32, i32) {
    %c0_i32 = arith.constant 0 : i32
    %c0_i32_0 = arith.constant 0 : i32
    %c0_i32_1 = arith.constant 0 : i32
    %c0_i32_2 = arith.constant 0 : i32
    return %c0_i32, %c0_i32_0, %c0_i32_1 : i32, i32, i32
  }
  func.func @transform_3(%arg0: i32) -> (i32, i32) {
    %c0_i32 = arith.constant 0 : i32
    %c0_i32_0 = arith.constant 0 : i32
    %c0_i32_1 = arith.constant 0 : i32
    return %c0_i32, %c0_i32_0 : i32, i32
  }
}

</mosaic_0001>

<llo_original>
// kernel: batchnorm_maxout_forward.1
$region0: #{batchnorm_maxout_forward.1}
  #allocation0 [shape = 'u32[]', space=smem, size = 0x4, offset = 0x4, fixed_abs, tag = 'smem constant byte address 0x4 - core index']
  #allocation1 [shape = 'u32[144,128]{1,0:T(1,128)}', space=vmem, size = 0x12000, scoped, tag = 'internal scratch']
  %s0 = inlined_call_operand.vmem [shape: f32[8,128], index: 0, kind: input, shape index: {}]
  %s1 = inlined_call_operand.vmem [shape: f32[3,3,128], index: 1, kind: input, shape index: {}]
  %s2 = inlined_call_operand.hbm [shape: bf16[3,128,128], index: 2, kind: input, shape index: {}]
  %s3 = inlined_call_operand.hbm [shape: f32[8,128], index: 3, kind: output, shape index: {}]
  %s4 = sld [smem:[#allocation0]]
  $region26: #{batchnorm_maxout_forward.1} parent=0
    _
  %s6 = ssub.s32 1, %s4
  %s7 = scalar_select 0, %s6, %s4
  $region1: #{batchnorm_maxout_forward.1} parent=0
    #allocation2 [shape = 'u8[98304]{0}', space=vmem, size = 0x18000, scoped, tag = 'input window, operand 2, single buffered']
    #allocation3 [shape = 's32[1]{0}', space=sflag, size = 0x4, scoped, tag = 'scoped memory for batchnorm_maxout_forward.1']
    #allocation4 [shape = 's32[1]{0}', space=sflag, size = 0x4, scoped, tag = 'scoped memory for batchnorm_maxout_forward.1']
    #allocation5 [shape = 'u8[4096]{0}', space=vmem, size = 0x1000, scoped, tag = 'output window, operand 0, single buffered']
    %8 = vsyncpa [#allocation3], 0
    %9 = vsyncpa [#allocation4], 0
    // Predicated region
    $region2: #{batchnorm_maxout_forward.1} parent=1 // pred_check
      _
    $region3: #{batchnorm_maxout_forward.1} parent=1 // pred_check_branch
      %11 = sbr.rel (0) target = $region5
    $region4: #{batchnorm_maxout_forward.1} parent=1 // pred_region
      _
    $region5: #{batchnorm_maxout_forward.1} parent=1 // pred_fallthru
      _
    // Predicated region
    $region6: #{batchnorm_maxout_forward.1} parent=1 // pred_check
      _
    $region7: #{batchnorm_maxout_forward.1} parent=1 // pred_check_branch
      %13 = sbr.rel (0) target = $region9
    $region8: #{batchnorm_maxout_forward.1} parent=1 // pred_region
      _
    $region9: #{batchnorm_maxout_forward.1} parent=1 // pred_fallthru
      _
    // Predicated region
    $region10: #{batchnorm_maxout_forward.1} parent=1 // pred_check
      _
    $region11: #{batchnorm_maxout_forward.1} parent=1 // pred_check_branch
      %15 = sbr.rel (0) target = $region13
    $region12: #{batchnorm_maxout_forward.1} parent=1 // pred_region
      %s17 = ssub.s32 3072, 3072
      %18 = vsyncadd [#allocation3], %s17
      %s19 = sshll.u32 [#allocation2], 4
      %s20 = int_to_ptr.vmem [resolvable:$true] %s19
      %25 = dma.hbm_to_vmem [thread:$0]  %s2, 3072, %s20, [#allocation3], 64, 64, 4
    $region13: #{batchnorm_maxout_forward.1} parent=1 // pred_fallthru
      _
    // Predicated region
    $region14: #{batchnorm_maxout_forward.1} parent=1 // pred_check
      _
    $region15: #{batchnorm_maxout_forward.1} parent=1 // pred_check_branch
      %27 = sbr.rel (0) target = $region17
    $region16: #{batchnorm_maxout_forward.1} parent=1 // pred_region
      %28 = dma.done [#allocation3], 3072
    $region17: #{batchnorm_maxout_forward.1} parent=1 // pred_fallthru
      _
    %v30 = vld [vmem:[%s0] sm:$0xff]
    %v31 = vld [vmem:[%s1] sm:$0x7]
    %v32 = vrot.slane %v30, 4
    %v33 = vadd.f32 %v30, %v32
    %v34 = vrot.slane %v33, 2
    %v35 = vadd.f32 %v33, %v34
    %v36 = vrot.slane %v35, 1
    %v37 = vadd.f32 %v35, %v36
    %v38 = vmul.f32 %v37, 0.125
    %v39 = vmul.f32 %v30, %v30
    %v40 = vrot.slane %v39, 4
    %v41 = vadd.f32 %v39, %v40
    %v42 = vrot.slane %v41, 2
    %v43 = vadd.f32 %v41, %v42
    %v44 = vrot.slane %v43, 1
    %v45 = vadd.f32 %v43, %v44
    %v46 = vmul.f32 %v45, 0.125
    %v47 = vmul.f32 %v38, %v38
    %v48 = vsub.f32 %v46, %v47
    %v49 = vmax.f32 %v48, 0.0
    %v50 = vadd.f32 %v49, 1e-05
    %v51 = vrsqrt.pop %v50
    %v52 = vmul.f32 %v31, %v51
    %v53 = vmul.f32 %v38, %v52
    %v55 = vrot.slane %v53, 7
    %v57 = vsub.f32 %v31, %v55
    %v58 = vlaneseq
    %v59 = vshrl.u32 %v58, 7
    %v60 = vsub.s32 0, %v59
    %v61 = vrot.slane %v52, %v60
    %v62 = vmul.f32 %v30, %v61
    %v63 = vlaneseq
    %v64 = vshrl.u32 %v63, 7
    %v65 = vsub.s32 1, %v64
    %v66 = vrot.slane %v57, %v65
    %v67 = vadd.f32 %v62, %v66
    %v68 = vpack.c.bf16 %v67, %v67
    %v69 = vld [vmem:[#allocation2] sm:$0xf]
    %v70 = vld [vmem:[#allocation2 + $0x4] sm:$0xf]
    %v71 = vld [vmem:[#allocation2 + $0x8] sm:$0xf]
    %v72 = vld [vmem:[#allocation2 + $0xc] sm:$0xf]
    %v73 = vld [vmem:[#allocation2 + $0x10] sm:$0xf]
    %v74 = vld [vmem:[#allocation2 + $0x14] sm:$0xf]
    %v75 = vld [vmem:[#allocation2 + $0x18] sm:$0xf]
    %v76 = vld [vmem:[#allocation2 + $0x1c] sm:$0xf]
    %v77 = vld [vmem:[#allocation2 + $0x20] sm:$0xf]
    %v78 = vld [vmem:[#allocation2 + $0x24] sm:$0xf]
    %v79 = vld [vmem:[#allocation2 + $0x28] sm:$0xf]
    %v80 = vld [vmem:[#allocation2 + $0x2c] sm:$0xf]
    %v81 = vld [vmem:[#allocation2 + $0x30] sm:$0xf]
    %v82 = vld [vmem:[#allocation2 + $0x34] sm:$0xf]
    %v83 = vld [vmem:[#allocation2 + $0x38] sm:$0xf]
    %v84 = vld [vmem:[#allocation2 + $0x3c] sm:$0xf]
    %v85 = vlaneseq
    %v86 = vshrl.u32 %v85, 7
    %v87 = vsub.s32 2, %v86
    %v88 = vrot.slane %v31, %v87
    %v105 = vunpack.c.l.b16 %v69
    %v106 = vunpack.c.l.b16 %v70
    %v107 = vunpack.c.l.b16 %v71
    %v108 = vunpack.c.l.b16 %v72
    %v109 = vunpack.c.l.b16 %v73
    %v110 = vunpack.c.l.b16 %v74
    %v111 = vunpack.c.l.b16 %v75
    %v112 = vunpack.c.l.b16 %v76
    %v113 = vunpack.c.l.b16 %v77
    %v114 = vunpack.c.l.b16 %v78
    %v115 = vunpack.c.l.b16 %v79
    %v116 = vunpack.c.l.b16 %v80
    %v117 = vunpack.c.l.b16 %v81
    %v118 = vunpack.c.l.b16 %v82
    %v119 = vunpack.c.l.b16 %v83
    %v120 = vunpack.c.l.b16 %v84
    %v121 = vpack.c.b16 %v106, %v105
    %v122 = vpack.c.b16 %v108, %v107
    %v123 = vpack.c.b16 %v110, %v109
    %v124 = vpack.c.b16 %v112, %v111
    %v125 = vpack.c.b16 %v114, %v113
    %v126 = vpack.c.b16 %v116, %v115
    %v127 = vpack.c.b16 %v118, %v117
    %v128 = vpack.c.b16 %v120, %v119
    %137 = vmatprep.subr.bf16.mxu0 0
    %138 = vmatpush1.bf16.msra.mxu0 %v121
    %139 = vmatprep.subr.bf16.mxu0 0
    %140 = vmatpush1.bf16.msra.mxu0 %v122
    %141 = vmatprep.subr.bf16.mxu0 0
    %142 = vmatpush1.bf16.msra.mxu0 %v123
    %143 = vmatprep.subr.bf16.mxu0 0
    %144 = vmatpush1.bf16.msra.mxu0 %v124
    %145 = vmatprep.subr.bf16.mxu0 0
    %146 = vmatpush1.bf16.msra.mxu0 %v125
    %147 = vmatprep.subr.bf16.mxu0 0
    %148 = vmatpush1.bf16.msra.mxu0 %v126
    %149 = vmatprep.subr.bf16.mxu0 0
    %150 = vmatpush1.bf16.msra.mxu0 %v127
    %151 = vmatprep.subr.bf16.mxu0 0
    %152 = vmatpush1.bf16.msra.mxu0 %v128
    %153 = vmatprep.subr.bf16.mxu0 0
    %154 = vmatpush1.bf16.msra.mxu0 0
    %155 = vmatprep.subr.bf16.mxu0 0
    %156 = vmatpush1.bf16.msra.mxu0 0
    %157 = vmatprep.subr.bf16.mxu0 0
    %158 = vmatpush1.bf16.msra.mxu0 0
    %159 = vmatprep.subr.bf16.mxu0 0
    %160 = vmatpush1.bf16.msra.mxu0 0
    %161 = vmatprep.subr.bf16.mxu0 0
    %162 = vmatpush1.bf16.msra.mxu0 0
    %163 = vmatprep.subr.bf16.mxu0 0
    %164 = vmatpush1.bf16.msra.mxu0 0
    %165 = vmatprep.subr.bf16.mxu0 0
    %166 = vmatpush1.bf16.msra.mxu0 0
    %167 = vmatprep.subr.bf16.mxu0 0
    %168 = vmatpush1.bf16.msra.mxu0 0
    %169 = vmatprep.mubr.bf16.mxu0 0
    %170 = vmatmul.mubr.bf16.gmra.mrb[0].mxu0 %v68
    %v171 = vpop.f32.mrb[0].mxu0
    %v172 = vadd.f32 %v88, %v171
    %v173 = vpop.f32.mrb[0].mxu0
    %v174 = vpop.f32.mrb[0].mxu0
    %v175 = vpop.f32.mrb[0].mxu0
    %176 = vdwg.mxu0
    %177 = vrot.lane.b32.xlu0 %v172, 64
    %v178 = vpop.permute.xlu0 %177
    %v179 = vmax.f32 %v172, %v178
    %180 = vrot.lane.b32.xlu0 %v179, 96
    %v181 = vpop.permute.xlu0 %180
    %v182 = vmax.f32 %v179, %v181
    %s183 = scalar_lea.vmem %s1, 4
    %v184 = vld [vmem:[%s183] sm:$0x7]
    %v185 = vrot.slane %v182, 4
    %v186 = vadd.f32 %v182, %v185
    %v187 = vrot.slane %v186, 2
    %v188 = vadd.f32 %v186, %v187
    %v189 = vrot.slane %v188, 1
    %v190 = vadd.f32 %v188, %v189
    %v191 = vmul.f32 %v190, 0.125
    %v192 = vmul.f32 %v182, %v182
    %v193 = vrot.slane %v192, 4
    %v194 = vadd.f32 %v192, %v193
    %v195 = vrot.slane %v194, 2
    %v196 = vadd.f32 %v194, %v195
    %v197 = vrot.slane %v196, 1
    %v198 = vadd.f32 %v196, %v197
    %v199 = vmul.f32 %v198, 0.125
    %v200 = vmul.f32 %v191, %v191
    %v201 = vsub.f32 %v199, %v200
    %v202 = vmax.f32 %v201, 0.0
    %v203 = vadd.f32 %v202, 1e-05
    %v204 = vrsqrt.pop %v203
    %v205 = vmul.f32 %v184, %v204
    %v206 = vmul.f32 %v191, %v205
    %v208 = vrot.slane %v206, 7
    %v210 = vsub.f32 %v184, %v208
    %v211 = vlaneseq
    %v212 = vshrl.u32 %v211, 7
    %v213 = vsub.s32 0, %v212
    %v214 = vrot.slane %v205, %v213
    %v215 = vmul.f32 %v182, %v214
    %v216 = vlaneseq
    %v217 = vshrl.u32 %v216, 7
    %v218 = vsub.s32 1, %v217
    %v219 = vrot.slane %v210, %v218
    %v220 = vadd.f32 %v215, %v219
    %v221 = vpack.c.bf16 %v220, %v220
    %s222 = scalar_lea.vmem [#allocation2], 64
    %v223 = vld [vmem:[%s222] sm:$0xf]
    %v224 = vld [vmem:[%s222 + $0x4] sm:$0xf]
    %v225 = vld [vmem:[%s222 + $0x8] sm:$0xf]
    %v226 = vld [vmem:[%s222 + $0xc] sm:$0xf]
    %v227 = vld [vmem:[%s222 + $0x10] sm:$0xf]
    %v228 = vld [vmem:[%s222 + $0x14] sm:$0xf]
    %v229 = vld [vmem:[%s222 + $0x18] sm:$0xf]
    %v230 = vld [vmem:[%s222 + $0x1c] sm:$0xf]
    %v231 = vld [vmem:[%s222 + $0x20] sm:$0xf]
    %v232 = vld [vmem:[%s222 + $0x24] sm:$0xf]
    %v233 = vld [vmem:[%s222 + $0x28] sm:$0xf]
    %v234 = vld [vmem:[%s222 + $0x2c] sm:$0xf]
    %v235 = vld [vmem:[%s222 + $0x30] sm:$0xf]
    %v236 = vld [vmem:[%s222 + $0x34] sm:$0xf]
    %v237 = vld [vmem:[%s222 + $0x38] sm:$0xf]
    %v238 = vld [vmem:[%s222 + $0x3c] sm:$0xf]
    %v239 = vlaneseq
    %v240 = vshrl.u32 %v239, 7
    %v241 = vsub.s32 2, %v240
    %v242 = vrot.slane %v184, %v241
    %v259 = vunpack.c.l.b16 %v223
    %v260 = vunpack.c.l.b16 %v224
    %v261 = vunpack.c.l.b16 %v225
    %v262 = vunpack.c.l.b16 %v226
    %v263 = vunpack.c.l.b16 %v227
    %v264 = vunpack.c.l.b16 %v228
    %v265 = vunpack.c.l.b16 %v229
    %v266 = vunpack.c.l.b16 %v230
    %v267 = vunpack.c.l.b16 %v231
    %v268 = vunpack.c.l.b16 %v232
    %v269 = vunpack.c.l.b16 %v233
    %v270 = vunpack.c.l.b16 %v234
    %v271 = vunpack.c.l.b16 %v235
    %v272 = vunpack.c.l.b16 %v236
    %v273 = vunpack.c.l.b16 %v237
    %v274 = vunpack.c.l.b16 %v238
    %v275 = vpack.c.b16 %v260, %v259
    %v276 = vpack.c.b16 %v262, %v261
    %v277 = vpack.c.b16 %v264, %v263
    %v278 = vpack.c.b16 %v266, %v265
    %v279 = vpack.c.b16 %v268, %v267
    %v280 = vpack.c.b16 %v270, %v269
    %v281 = vpack.c.b16 %v272, %v271
    %v282 = vpack.c.b16 %v274, %v273
    %291 = vmatprep.subr.bf16.mxu0 0
    %292 = vmatpush1.bf16.msra.mxu0 %v275
    %293 = vmatprep.subr.bf16.mxu0 0
    %294 = vmatpush1.bf16.msra.mxu0 %v276
    %295 = vmatprep.subr.bf16.mxu0 0
    %296 = vmatpush1.bf16.msra.mxu0 %v277
    %297 = vmatprep.subr.bf16.mxu0 0
    %298 = vmatpush1.bf16.msra.mxu0 %v278
    %299 = vmatprep.subr.bf16.mxu0 0
    %300 = vmatpush1.bf16.msra.mxu0 %v279
    %301 = vmatprep.subr.bf16.mxu0 0
    %302 = vmatpush1.bf16.msra.mxu0 %v280
    %303 = vmatprep.subr.bf16.mxu0 0
    %304 = vmatpush1.bf16.msra.mxu0 %v281
    %305 = vmatprep.subr.bf16.mxu0 0
    %306 = vmatpush1.bf16.msra.mxu0 %v282
    %307 = vmatprep.subr.bf16.mxu0 0
    %308 = vmatpush1.bf16.msra.mxu0 0
    %309 = vmatprep.subr.bf16.mxu0 0
    %310 = vmatpush1.bf16.msra.mxu0 0
    %311 = vmatprep.subr.bf16.mxu0 0
    %312 = vmatpush1.bf16.msra.mxu0 0
    %313 = vmatprep.subr.bf16.mxu0 0
    %314 = vmatpush1.bf16.msra.mxu0 0
    %315 = vmatprep.subr.bf16.mxu0 0
    %316 = vmatpush1.bf16.msra.mxu0 0
    %317 = vmatprep.subr.bf16.mxu0 0
    %318 = vmatpush1.bf16.msra.mxu0 0
    %319 = vmatprep.subr.bf16.mxu0 0
    %320 = vmatpush1.bf16.msra.mxu0 0
    %321 = vmatprep.subr.bf16.mxu0 0
    %322 = vmatpush1.bf16.msra.mxu0 0
    %323 = vmatprep.mubr.bf16.mxu0 0
    %324 = vmatmul.mubr.bf16.gmra.mrb[0].mxu0 %v221
    %v325 = vpop.f32.mrb[0].mxu0
    %v326 = vadd.f32 %v242, %v325
    %v327 = vpop.f32.mrb[0].mxu0
    %v328 = vpop.f32.mrb[0].mxu0
    %v329 = vpop.f32.mrb[0].mxu0
    %330 = vdwg.mxu0
    %331 = vrot.lane.b32.xlu0 %v326, 64
    %v332 = vpop.permute.xlu0 %331
    %v333 = vmax.f32 %v326, %v332
    %334 = vrot.lane.b32.xlu0 %v333, 96
    %v335 = vpop.permute.xlu0 %334
    %v336 = vmax.f32 %v333, %v335
    %s337 = scalar_lea.vmem %s1, 8
    %v338 = vld [vmem:[%s337] sm:$0x7]
    %v339 = vrot.slane %v336, 4
    %v340 = vadd.f32 %v336, %v339
    %v341 = vrot.slane %v340, 2
    %v342 = vadd.f32 %v340, %v341
    %v343 = vrot.slane %v342, 1
    %v344 = vadd.f32 %v342, %v343
    %v345 = vmul.f32 %v344, 0.125
    %v346 = vmul.f32 %v336, %v336
    %v347 = vrot.slane %v346, 4
    %v348 = vadd.f32 %v346, %v347
    %v349 = vrot.slane %v348, 2
    %v350 = vadd.f32 %v348, %v349
    %v351 = vrot.slane %v350, 1
    %v352 = vadd.f32 %v350, %v351
    %v353 = vmul.f32 %v352, 0.125
    %v354 = vmul.f32 %v345, %v345
    %v355 = vsub.f32 %v353, %v354
    %v356 = vmax.f32 %v355, 0.0
    %v357 = vadd.f32 %v356, 1e-05
    %v358 = vrsqrt.pop %v357
    %v359 = vmul.f32 %v338, %v358
    %v360 = vmul.f32 %v345, %v359
    %v362 = vrot.slane %v360, 7
    %v364 = vsub.f32 %v338, %v362
    %v365 = vlaneseq
    %v366 = vshrl.u32 %v365, 7
    %v367 = vsub.s32 0, %v366
    %v368 = vrot.slane %v359, %v367
    %v369 = vmul.f32 %v336, %v368
    %v370 = vlaneseq
    %v371 = vshrl.u32 %v370, 7
    %v372 = vsub.s32 1, %v371
    %v373 = vrot.slane %v364, %v372
    %v374 = vadd.f32 %v369, %v373
    %v375 = vpack.c.bf16 %v374, %v374
    %s376 = scalar_lea.vmem [#allocation2], 128
    %v377 = vld [vmem:[%s376] sm:$0xf]
    %v378 = vld [vmem:[%s376 + $0x4] sm:$0xf]
    %v379 = vld [vmem:[%s376 + $0x8] sm:$0xf]
    %v380 = vld [vmem:[%s376 + $0xc] sm:$0xf]
    %v381 = vld [vmem:[%s376 + $0x10] sm:$0xf]
    %v382 = vld [vmem:[%s376 + $0x14] sm:$0xf]
    %v383 = vld [vmem:[%s376 + $0x18] sm:$0xf]
    %v384 = vld [vmem:[%s376 + $0x1c] sm:$0xf]
    %v385 = vld [vmem:[%s376 + $0x20] sm:$0xf]
    %v386 = vld [vmem:[%s376 + $0x24] sm:$0xf]
    %v387 = vld [vmem:[%s376 + $0x28] sm:$0xf]
    %v388 = vld [vmem:[%s376 + $0x2c] sm:$0xf]
    %v389 = vld [vmem:[%s376 + $0x30] sm:$0xf]
    %v390 = vld [vmem:[%s376 + $0x34] sm:$0xf]
    %v391 = vld [vmem:[%s376 + $0x38] sm:$0xf]
    %v392 = vld [vmem:[%s376 + $0x3c] sm:$0xf]
    %v393 = vlaneseq
    %v394 = vshrl.u32 %v393, 7
    %v395 = vsub.s32 2, %v394
    %v396 = vrot.slane %v338, %v395
    %v413 = vunpack.c.l.b16 %v377
    %v414 = vunpack.c.l.b16 %v378
    %v415 = vunpack.c.l.b16 %v379
    %v416 = vunpack.c.l.b16 %v380
    %v417 = vunpack.c.l.b16 %v381
    %v418 = vunpack.c.l.b16 %v382
    %v419 = vunpack.c.l.b16 %v383
    %v420 = vunpack.c.l.b16 %v384
    %v421 = vunpack.c.l.b16 %v385
    %v422 = vunpack.c.l.b16 %v386
    %v423 = vunpack.c.l.b16 %v387
    %v424 = vunpack.c.l.b16 %v388
    %v425 = vunpack.c.l.b16 %v389
    %v426 = vunpack.c.l.b16 %v390
    %v427 = vunpack.c.l.b16 %v391
    %v428 = vunpack.c.l.b16 %v392
    %v429 = vpack.c.b16 %v414, %v413
    %v430 = vpack.c.b16 %v416, %v415
    %v431 = vpack.c.b16 %v418, %v417
    %v432 = vpack.c.b16 %v420, %v419
    %v433 = vpack.c.b16 %v422, %v421
    %v434 = vpack.c.b16 %v424, %v423
    %v435 = vpack.c.b16 %v426, %v425
    %v436 = vpack.c.b16 %v428, %v427
    %445 = vmatprep.subr.bf16.mxu0 0
    %446 = vmatpush1.bf16.msra.mxu0 %v429
    %447 = vmatprep.subr.bf16.mxu0 0
    %448 = vmatpush1.bf16.msra.mxu0 %v430
    %449 = vmatprep.subr.bf16.mxu0 0
    %450 = vmatpush1.bf16.msra.mxu0 %v431
    %451 = vmatprep.subr.bf16.mxu0 0
    %452 = vmatpush1.bf16.msra.mxu0 %v432
    %453 = vmatprep.subr.bf16.mxu0 0
    %454 = vmatpush1.bf16.msra.mxu0 %v433
    %455 = vmatprep.subr.bf16.mxu0 0
    %456 = vmatpush1.bf16.msra.mxu0 %v434
    %457 = vmatprep.subr.bf16.mxu0 0
    %458 = vmatpush1.bf16.msra.mxu0 %v435
    %459 = vmatprep.subr.bf16.mxu0 0
    %460 = vmatpush1.bf16.msra.mxu0 %v436
    %461 = vmatprep.subr.bf16.mxu0 0
    %462 = vmatpush1.bf16.msra.mxu0 0
    %463 = vmatprep.subr.bf16.mxu0 0
    %464 = vmatpush1.bf16.msra.mxu0 0
    %465 = vmatprep.subr.bf16.mxu0 0
    %466 = vmatpush1.bf16.msra.mxu0 0
    %467 = vmatprep.subr.bf16.mxu0 0
    %468 = vmatpush1.bf16.msra.mxu0 0
    %469 = vmatprep.subr.bf16.mxu0 0
    %470 = vmatpush1.bf16.msra.mxu0 0
    %471 = vmatprep.subr.bf16.mxu0 0
    %472 = vmatpush1.bf16.msra.mxu0 0
    %473 = vmatprep.subr.bf16.mxu0 0
    %474 = vmatpush1.bf16.msra.mxu0 0
    %475 = vmatprep.subr.bf16.mxu0 0
    %476 = vmatpush1.bf16.msra.mxu0 0
    %477 = vmatprep.mubr.bf16.mxu0 0
    %478 = vmatmul.mubr.bf16.gmra.mrb[0].mxu0 %v375
    %v479 = vpop.f32.mrb[0].mxu0
    %v480 = vadd.f32 %v396, %v479
    %v481 = vpop.f32.mrb[0].mxu0
    %v482 = vpop.f32.mrb[0].mxu0
    %v483 = vpop.f32.mrb[0].mxu0
    %484 = vdwg.mxu0
    %485 = vrot.lane.b32.xlu0 %v480, 96
    %v486 = vpop.permute.xlu0 %485
    %v487 = vmax.f32 %v480, %v486
    %488 = vrot.lane.b32.xlu0 %v487, 112
    %v489 = vpop.permute.xlu0 %488
    %v490 = vmax.f32 %v487, %v489
    %491 = vst [vmem:[#allocation5] sm:$0xff] %v490
    // Predicated region
    $region18: #{batchnorm_maxout_forward.1} parent=1 // pred_check
      _
    $region19: #{batchnorm_maxout_forward.1} parent=1 // pred_check_branch
      %493 = sbr.rel (0) target = $region21
    $region20: #{batchnorm_maxout_forward.1} parent=1 // pred_region
      %s495 = ssub.s32 128, 128
      %496 = vsyncadd [#allocation4], %s495
      %s498 = sshll.u32 [#allocation5], 4
      %s499 = int_to_ptr.vmem [resolvable:$true] %s498
      %501 = dma.vmem_to_hbm [thread:$0]  %s499, 128, %s3, [#allocation4]
    $region21: #{batchnorm_maxout_forward.1} parent=1 // pred_fallthru
      _
    // Predicated region
    $region22: #{batchnorm_maxout_forward.1} parent=1 // pred_check
      _
    $region23: #{batchnorm_maxout_forward.1} parent=1 // pred_check_branch
      %503 = sbr.rel (0) target = $region25
    $region24: #{batchnorm_maxout_forward.1} parent=1 // pred_region
      %504 = dma.done [#allocation4], 128
    $region25: #{batchnorm_maxout_forward.1} parent=1 // pred_fallthru
      _
    %505 = vsyncpa [#allocation3], 1
    %506 = vsyncpa [#allocation4], 1

</llo_original>
